<compile_context>
chip_gen: v7x
topology: tpu7x:2x2x1
jax: 0.10.0
libtpu: 0.0.40
codegen_flags: <defaults>
</compile_context>

<pallas_src>
import jax
import jax.numpy as jnp
import numpy as np
from jax import lax
from jax.experimental import pallas as pl
from jax.experimental.pallas import tpu as pltpu


def _make_conv_stats_kernel(TB, L, C, K):
    """Circular Conv1d(K, pad=1) on a (TB, L, C) batch tile + partial BN stats."""

    def kernel(x_ref, w_ref, y_ref, s1_ref, s2_ref):
        xb = x_ref[...]                                            # (TB, L, C)
        # circular padding=1 along L, done in-kernel (no wrapper HBM round trip)
        xp = jnp.concatenate([xb[:, L - 1:L, :], xb, xb[:, 0:1, :]], axis=1)
        # conv as K shifted matmuls with the batch tile folded into M = TB*L
        acc = jnp.dot(xp[:, 0:L, :].reshape(TB * L, C), w_ref[0],
                      preferred_element_type=jnp.float32)
        for k in range(1, K):
            acc = acc + jnp.dot(xp[:, k:k + L, :].reshape(TB * L, C), w_ref[k],
                                preferred_element_type=jnp.float32)
        # conv bias intentionally omitted: exactly cancelled by training-mode BN
        y_ref[...] = acc.reshape(TB, L, C)
        # single-pass BN statistics: per-channel partial sum and sum of squares
        s1_ref[0] = jnp.sum(acc, axis=0, keepdims=True)
        s2_ref[0] = jnp.sum(acc * acc, axis=0, keepdims=True)

    return kernel


def _make_bn_elu_pool_kernel(L, C, L_out):
    """Fused BN affine + MaxPool1d(3, stride=2, pad=1) + ELU for one batch row."""

    def kernel(y_ref, scale_ref, shift_ref, out_ref, zp_ref):
        # BatchNorm folded into a single affine: z = y * scale + shift
        z = y_ref[0] * scale_ref[...] + shift_ref[...]             # (L, C)
        neg = jnp.full((1, C), -jnp.inf, jnp.float32)
        zp_ref[pl.ds(0, L), :] = z                                 # aligned store
        zp_ref[pl.ds(L, 1), :] = neg                               # right pool pad
        # window j covers z[2j-1], z[2j], z[2j+1]  (z[-1] = z[L] = -inf pads);
        # vectorized as an elementwise max of strided slabs (no per-window loop)
        b = zp_ref[pl.ds(0, L_out, stride=2), :]                   # z[2j]
        c = zp_ref[pl.ds(1, L_out, stride=2), :]                   # z[2j+1]
        a = jnp.concatenate([neg, c[:L_out - 1, :]], axis=0)       # z[2j-1]
        m = jnp.maximum(jnp.maximum(a, b), c)                      # (L_out, C)
        # ELU after the max is exact (ELU is monotone increasing; pad never wins)
        out_ref[0] = jnp.where(m > 0.0, m, jnp.exp(jnp.minimum(m, 0.0)) - 1.0)

    return kernel


def _pick_batch_tile(B, L):
    """Fold batch into the matmul M dim when L is small; otherwise grid over B."""
    if L % 8 != 0:                 # keep the in-kernel (TB,L,C)->(TB*L,C) reshape trivial
        return 1
    target = max(1, 256 // L)
    tb = 1
    for d in range(1, min(B, target) + 1):
        if B % d == 0:
            tb = d
    return tb


def conv_layer_forward(x, w_pt, bias, gamma, beta, *, kernel_size=3, eps=1e-5,
                       compute_dtype=jnp.float32):
    """x: (B, L, C) float32.  w_pt: PyTorch Conv1d weight (C_out, C_in, K).

    `bias` (the Conv1d bias) is accepted for API parity but unused: a constant
    per-channel shift is exactly cancelled by the training-mode BatchNorm that
    immediately follows (the mean absorbs it; the variance is unchanged).
    For v6e/v7x pass compute_dtype=jnp.bfloat16 to run the MXU at native rate
    (f32 accumulation is preserved via preferred_element_type).
    """
    del bias
    B, L, C = x.shape
    K = kernel_size
    assert K == 3, "ConvLayer uses kernel_size=3 (conv padding=1, pool padding=1)"
    L_out = (L + 2 - K) // 2 + 1

    TB = _pick_batch_tile(B, L)
    nb = B // TB

    # PyTorch (C_out, C_in, K) -> per-tap matmul weights (K, C_in, C_out)
    w = jnp.transpose(w_pt, (2, 1, 0)).astype(compute_dtype)
    x_c = x.astype(compute_dtype)

    # ---- pass 1: circular conv + per-tile partial BN statistics ----
    y, s1, s2 = pl.pallas_call(
        _make_conv_stats_kernel(TB, L, C, K),
        out_shape=(jax.ShapeDtypeStruct((B, L, C), jnp.float32),
                   jax.ShapeDtypeStruct((nb, 1, C), jnp.float32),
                   jax.ShapeDtypeStruct((nb, 1, C), jnp.float32)),
        grid=(nb,),
        in_specs=[pl.BlockSpec((TB, L, C), lambda i: (i, 0, 0)),
                  pl.BlockSpec((K, C, C), lambda i: (0, 0, 0))],
        out_specs=(pl.BlockSpec((TB, L, C), lambda i: (i, 0, 0)),
                   pl.BlockSpec((1, 1, C), lambda i: (i, 0, 0)),
                   pl.BlockSpec((1, 1, C), lambda i: (i, 0, 0))),
        compiler_params=pltpu.CompilerParams(dimension_semantics=("parallel",)),
    )(x_c, w)

    # ---- fold BatchNorm1d (training-mode batch stats) into one scale/shift ----
    n = jnp.float32(B * L)
    mean = jnp.sum(s1, axis=0)[0] / n                                  # (C,)
    var = jnp.maximum(jnp.sum(s2, axis=0)[0] / n - mean * mean, 0.0)   # biased var
    scale = gamma.astype(jnp.float32) * lax.rsqrt(var + eps)
    shift = beta.astype(jnp.float32) - mean * scale
    # TODO(synk): running_mean/running_var buffer updates (a training-time side
    # effect of nn.BatchNorm1d) are not reproduced; they don't affect the output.

    # ---- pass 2: fused BN affine + MaxPool1d(3, stride=2, pad=1) + ELU ----
    out = pl.pallas_call(
        _make_bn_elu_pool_kernel(L, C, L_out),
        out_shape=jax.ShapeDtypeStruct((B, L_out, C), jnp.float32),
        grid=(B,),
        in_specs=[pl.BlockSpec((1, L, C), lambda b: (b, 0, 0)),
                  pl.BlockSpec((1, C), lambda b: (0, 0)),
                  pl.BlockSpec((1, C), lambda b: (0, 0))],
        out_specs=pl.BlockSpec((1, L_out, C), lambda b: (b, 0, 0)),
        scratch_shapes=[pltpu.VMEM((L + 1, C), jnp.float32)],
        compiler_params=pltpu.CompilerParams(dimension_semantics=("parallel",)),
    )(y, scale.reshape(1, C), shift.reshape(1, C))
    return out


def conv_layer_reference(x, w_pt, bias, gamma, beta, *, kernel_size=3, eps=1e-5):
    """Pure-JAX reference with identical semantics (keeps the conv bias)."""
    B, L, C = x.shape
    K = kernel_size
    xp = jnp.concatenate([x[:, -1:, :], x, x[:, :1, :]], axis=1)
    windows = jnp.stack([xp[:, k:k + L, :] for k in range(K)], axis=2)  # (B,L,K,C)
    y = jnp.einsum('blkc,dck->bld', windows, w_pt) + bias               # (B,L,C)
    mean = y.mean(axis=(0, 1))
    var = y.var(axis=(0, 1))                                            # biased
    z = (y - mean) * lax.rsqrt(var + eps) * gamma + beta
    z = jnp.where(z > 0, z, jnp.exp(jnp.minimum(z, 0.0)) - 1.0)
    pad = jnp.full((B, 1, C), -jnp.inf, jnp.float32)
    p = jnp.concatenate([pad, z, pad], axis=1)
    L_out = (L + 2 - K) // 2 + 1
    out = jnp.stack([jnp.max(p[:, 2 * j:2 * j + K, :], axis=1)
                     for j in range(L_out)], axis=1)
    return out


if __name__ == "__main__":
    B, L, C, K = 2, 16, 8, 3

    key = jax.random.PRNGKey(0)
    kx, kw, kb = jax.random.split(key, 3)

    x = jax.random.normal(kx, (B, L, C), jnp.float32)

    # deterministic synthetic Conv1d parameters (PyTorch-style fan-in bound)
    bound = 1.0 / float(np.sqrt(C * K))
    conv_w = jax.random.uniform(kw, (C, C, K), jnp.float32, -bound, bound)
    conv_b = jax.random.uniform(kb, (C,), jnp.float32, -bound, bound)
    # BatchNorm1d default init
    bn_gamma = jnp.ones((C,), jnp.float32)
    bn_beta = jnp.zeros((C,), jnp.float32)

    ref = conv_layer_reference(x, conv_w, conv_b, bn_gamma, bn_beta, kernel_size=K)

    # f32 MXU path: tight check (also verifies the exact bias-cancellation by BN)
    out = conv_layer_forward(x, conv_w, conv_b, bn_gamma, bn_beta, kernel_size=K)
    out = jax.block_until_ready(out)
    np.testing.assert_allclose(np.asarray(out), np.asarray(ref),
                               rtol=1e-4, atol=1e-5)
    assert out.shape == (B, (L + 2 - K) // 2 + 1, C)

    # bf16 MXU path (native rate on v6e/v7x), f32 accumulation: loose check
    out_bf16 = conv_layer_forward(x, conv_w, conv_b, bn_gamma, bn_beta,
                                  kernel_size=K, compute_dtype=jnp.bfloat16)
    out_bf16 = jax.block_until_ready(out_bf16)
    np.testing.assert_allclose(np.asarray(out_bf16), np.asarray(ref),
                               rtol=6e-2, atol=6e-2)

    print("KERNEL_OK")
</pallas_src>

<mosaic_0001>
module attributes {stable_mosaic.version = 11 : i64} {
  func.func @kernel(%arg0: i32, %arg1: memref<2x16x8xf32, #tpu.memory_space<vmem>>, %arg2: memref<3x8x8xf32, #tpu.memory_space<vmem>>, %arg3: memref<2x16x8xf32, #tpu.memory_space<vmem>>, %arg4: memref<1x1x8xf32, #tpu.memory_space<vmem>>, %arg5: memref<1x1x8xf32, #tpu.memory_space<vmem>>) attributes {dimension_semantics = [#tpu.dimension_semantics<parallel>], iteration_bounds = array<i64: 1>, scalar_prefetch = 0 : i64, scratch_operands = 0 : i64, tpu.core_type = #tpu.core_type<tc>, window_params = [{transform_indices = @transform_0, window_bounds = array<i64: 2, 16, 8>}, {pipeline_mode = #tpu.pipeline_mode<synchronous>, transform_indices = @transform_1, window_bounds = array<i64: 3, 8, 8>}, {transform_indices = @transform_2, window_bounds = array<i64: 2, 16, 8>}, {transform_indices = @transform_3, window_bounds = array<i64: 1, 1, 8>}, {transform_indices = @transform_4, window_bounds = array<i64: 1, 1, 8>}]} {
    %c0 = arith.constant 0 : index
    %c0_0 = arith.constant 0 : index
    %c0_1 = arith.constant 0 : index
    %0 = vector.load %arg1[%c0, %c0_0, %c0_1] : memref<2x16x8xf32, #tpu.memory_space<vmem>>, vector<2x16x8xf32>
    %1 = vector.extract_strided_slice %0 {offsets = [0, 15, 0], sizes = [2, 1, 8], strides = [1, 1, 1]} : vector<2x16x8xf32> to vector<2x1x8xf32>
    %2 = vector.extract_strided_slice %0 {offsets = [0, 0, 0], sizes = [2, 1, 8], strides = [1, 1, 1]} : vector<2x16x8xf32> to vector<2x1x8xf32>
    %3 = tpu.concatenate %1, %0, %2 in 1 : vector<2x1x8xf32>, vector<2x16x8xf32>, vector<2x1x8xf32> -> vector<2x18x8xf32>
    %4 = vector.extract_strided_slice %3 {offsets = [0, 0, 0], sizes = [2, 16, 8], strides = [1, 1, 1]} : vector<2x18x8xf32> to vector<2x16x8xf32>
    %5 = vector.shape_cast %4 : vector<2x16x8xf32> to vector<32x8xf32>
    %c0_2 = arith.constant 0 : index
    %c0_3 = arith.constant 0 : index
    %c0_4 = arith.constant 0 : index
    %6 = vector.load %arg2[%c0_2, %c0_3, %c0_4] : memref<3x8x8xf32, #tpu.memory_space<vmem>>, vector<1x8x8xf32>
    %7 = vector.shape_cast %6 : vector<1x8x8xf32> to vector<8x8xf32>
    %cst = arith.constant dense<0.000000e+00> : vector<32x8xf32>
    %8 = tpu.matmul %5, %7, %cst {dimension_numbers = #tpu.dot_dimension_numbers<[1], [0], [0], [1], [0, 0, 1, 1], [], []>} : vector<32x8xf32>, vector<8x8xf32>, vector<32x8xf32> -> vector<32x8xf32>
    %9 = vector.extract_strided_slice %3 {offsets = [0, 1, 0], sizes = [2, 16, 8], strides = [1, 1, 1]} : vector<2x18x8xf32> to vector<2x16x8xf32>
    %10 = vector.shape_cast %9 : vector<2x16x8xf32> to vector<32x8xf32>
    %c1 = arith.constant 1 : index
    %c0_5 = arith.constant 0 : index
    %c0_6 = arith.constant 0 : index
    %11 = vector.load %arg2[%c1, %c0_5, %c0_6] : memref<3x8x8xf32, #tpu.memory_space<vmem>>, vector<1x8x8xf32>
    %12 = vector.shape_cast %11 : vector<1x8x8xf32> to vector<8x8xf32>
    %cst_7 = arith.constant dense<0.000000e+00> : vector<32x8xf32>
    %13 = tpu.matmul %10, %12, %cst_7 {dimension_numbers = #tpu.dot_dimension_numbers<[1], [0], [0], [1], [0, 0, 1, 1], [], []>} : vector<32x8xf32>, vector<8x8xf32>, vector<32x8xf32> -> vector<32x8xf32>
    %14 = arith.addf %8, %13 : vector<32x8xf32>
    %15 = vector.extract_strided_slice %3 {offsets = [0, 2, 0], sizes = [2, 16, 8], strides = [1, 1, 1]} : vector<2x18x8xf32> to vector<2x16x8xf32>
    %16 = vector.shape_cast %15 : vector<2x16x8xf32> to vector<32x8xf32>
    %c2 = arith.constant 2 : index
    %c0_8 = arith.constant 0 : index
    %c0_9 = arith.constant 0 : index
    %17 = vector.load %arg2[%c2, %c0_8, %c0_9] : memref<3x8x8xf32, #tpu.memory_space<vmem>>, vector<1x8x8xf32>
    %18 = vector.shape_cast %17 : vector<1x8x8xf32> to vector<8x8xf32>
    %cst_10 = arith.constant dense<0.000000e+00> : vector<32x8xf32>
    %19 = tpu.matmul %16, %18, %cst_10 {dimension_numbers = #tpu.dot_dimension_numbers<[1], [0], [0], [1], [0, 0, 1, 1], [], []>} : vector<32x8xf32>, vector<8x8xf32>, vector<32x8xf32> -> vector<32x8xf32>
    %20 = arith.addf %14, %19 : vector<32x8xf32>
    %21 = vector.shape_cast %20 : vector<32x8xf32> to vector<2x16x8xf32>
    %c0_11 = arith.constant 0 : index
    %c0_12 = arith.constant 0 : index
    %c0_13 = arith.constant 0 : index
    %22 = vector.load %arg3[%c0_11, %c0_12, %c0_13] : memref<2x16x8xf32, #tpu.memory_space<vmem>>, vector<2x16x8xf32>
    tpu.vector_store %arg3[%c0_11, %c0_12, %c0_13], %21 {strides = array<i32>} : memref<2x16x8xf32, #tpu.memory_space<vmem>>, vector<2x16x8xf32>,
    %cst_14 = arith.constant dense<0.000000e+00> : vector<8xf32>
    %23 = vector.multi_reduction <add>, %20, %cst_14 [0] : vector<32x8xf32> to vector<8xf32>
    %24 = vector.shape_cast %23 : vector<8xf32> to vector<1x8xf32>
    %c0_15 = arith.constant 0 : index
    %c0_16 = arith.constant 0 : index
    %c0_17 = arith.constant 0 : index
    %25 = vector.load %arg4[%c0_15, %c0_16, %c0_17] : memref<1x1x8xf32, #tpu.memory_space<vmem>>, vector<1x1x8xf32>
    %26 = vector.shape_cast %25 : vector<1x1x8xf32> to vector<1x8xf32>
    %27 = vector.shape_cast %24 : vector<1x8xf32> to vector<1x1x8xf32>
    tpu.vector_store %arg4[%c0_15, %c0_16, %c0_17], %27 {strides = array<i32>} : memref<1x1x8xf32, #tpu.memory_space<vmem>>, vector<1x1x8xf32>,
    %28 = arith.mulf %20, %20 : vector<32x8xf32>
    %cst_18 = arith.constant dense<0.000000e+00> : vector<8xf32>
    %29 = vector.multi_reduction <add>, %28, %cst_18 [0] : vector<32x8xf32> to vector<8xf32>
    %30 = vector.shape_cast %29 : vector<8xf32> to vector<1x8xf32>
    %c0_19 = arith.constant 0 : index
    %c0_20 = arith.constant 0 : index
    %c0_21 = arith.constant 0 : index
    %31 = vector.load %arg5[%c0_19, %c0_20, %c0_21] : memref<1x1x8xf32, #tpu.memory_space<vmem>>, vector<1x1x8xf32>
    %32 = vector.shape_cast %31 : vector<1x1x8xf32> to vector<1x8xf32>
    %33 = vector.shape_cast %30 : vector<1x8xf32> to vector<1x1x8xf32>
    tpu.vector_store %arg5[%c0_19, %c0_20, %c0_21], %33 {strides = array<i32>} : memref<1x1x8xf32, #tpu.memory_space<vmem>>, vector<1x1x8xf32>,
    return
  }
  func.func @transform_0(%arg0: i32) -> (i32, i32, i32) {
    %c0_i32 = arith.constant 0 : i32
    %c0_i32_0 = arith.constant 0 : i32
    %c0_i32_1 = arith.constant 0 : i32
    return %arg0, %c0_i32, %c0_i32_0 : i32, i32, i32
  }
  func.func @transform_1(%arg0: i32) -> (i32, i32, i32) {
    %c0_i32 = arith.constant 0 : i32
    %c0_i32_0 = arith.constant 0 : i32
    %c0_i32_1 = arith.constant 0 : i32
    %c0_i32_2 = arith.constant 0 : i32
    return %c0_i32, %c0_i32_0, %c0_i32_1 : i32, i32, i32
  }
  func.func @transform_2(%arg0: i32) -> (i32, i32, i32) {
    %c0_i32 = arith.constant 0 : i32
    %c0_i32_0 = arith.constant 0 : i32
    %c0_i32_1 = arith.constant 0 : i32
    return %arg0, %c0_i32, %c0_i32_0 : i32, i32, i32
  }
  func.func @transform_3(%arg0: i32) -> (i32, i32, i32) {
    %c0_i32 = arith.constant 0 : i32
    %c0_i32_0 = arith.constant 0 : i32
    %c0_i32_1 = arith.constant 0 : i32
    return %arg0, %c0_i32, %c0_i32_0 : i32, i32, i32
  }
  func.func @transform_4(%arg0: i32) -> (i32, i32, i32) {
    %c0_i32 = arith.constant 0 : i32
    %c0_i32_0 = arith.constant 0 : i32
    %c0_i32_1 = arith.constant 0 : i32
    return %arg0, %c0_i32, %c0_i32_0 : i32, i32, i32
  }
}

</mosaic_0001>

<llo_original>
// kernel: tpu_custom_call.1
$region0: #{tpu_custom_call.1}
  #allocation0 [shape = 'u32[]', space=smem, size = 0x4, offset = 0x4, fixed_abs, tag = 'smem constant byte address 0x4 - core index']
  #allocation1 [shape = 'u32[144,128]{1,0:T(1,128)}', space=vmem, size = 0x12000, scoped, tag = 'internal scratch']
  %s0 = inlined_call_operand.vmem [shape: f32[2,16,8], index: 0, kind: input, shape index: {}]
  %s1 = inlined_call_operand.vmem [shape: f32[3,8,8], index: 1, kind: input, shape index: {}]
  %s2 = inlined_call_operand.vmem [shape: f32[2,16,8], index: 2, kind: output, shape index: {0}]
  %s3 = inlined_call_operand.hbm [shape: f32[1,1,8], index: 3, kind: output, shape index: {1}]
  %s4 = inlined_call_operand.hbm [shape: f32[1,1,8], index: 4, kind: output, shape index: {2}]
  %5 = xla_tuple %s2, %s3, %s4
  %s6 = sld [smem:[#allocation0]]
  $region34: #{tpu_custom_call.1} parent=0
    _
  %s8 = ssub.s32 1, %s6
  %s9 = scalar_select 0, %s8, %s6
  $region1: #{tpu_custom_call.1} parent=0
    #allocation2 [shape = 'u8[512]{0}', space=vmem, size = 0x400, scoped, tag = 'output window, operand 1, single buffered']
    #allocation3 [shape = 's32[1]{0}', space=sflag, size = 0x4, scoped, tag = 'scoped memory for tpu_custom_call.1']
    #allocation4 [shape = 'u8[512]{0}', space=vmem, size = 0x400, scoped, tag = 'output window, operand 2, single buffered']
    #allocation5 [shape = 's32[1]{0}', space=sflag, size = 0x4, scoped, tag = 'scoped memory for tpu_custom_call.1']
    %10 = vsyncpa [#allocation3], 0
    %11 = vsyncpa [#allocation5], 0
    // Predicated region
    $region2: #{tpu_custom_call.1} parent=1 // pred_check
      _
    $region3: #{tpu_custom_call.1} parent=1 // pred_check_branch
      %13 = sbr.rel (0) target = $region5
    $region4: #{tpu_custom_call.1} parent=1 // pred_region
      _
    $region5: #{tpu_custom_call.1} parent=1 // pred_fallthru
      _
    // Predicated region
    $region6: #{tpu_custom_call.1} parent=1 // pred_check
      _
    $region7: #{tpu_custom_call.1} parent=1 // pred_check_branch
      %15 = sbr.rel (0) target = $region9
    $region8: #{tpu_custom_call.1} parent=1 // pred_region
      _
    $region9: #{tpu_custom_call.1} parent=1 // pred_fallthru
      _
    %v16 = vld [vmem:[%s0] sm:$0xff]
    %v17 = vld [vmem:[%s0 + $0x8] sm:$0xff]
    %v18 = vld [vmem:[%s0 + $0x10] sm:$0xff]
    %v19 = vld [vmem:[%s0 + $0x18] sm:$0xff]
    %v22 = vrot.slane %v17, 7
    %v23 = vrot.slane %v19, 7
    %vm28 = vcmask 1040384
    %v29 = vrot.slane %v16, 7
    %v30 = vsel %vm28, %v29, %v22
    %v31 = vrot.slane %v18, 7
    %v32 = vsel %vm28, %v31, %v23
    %v35 = vsel %vm28, %v22, %v29
    %v36 = vsel %vm28, %v23, %v31
    %v37 = vld [vmem:[%s1] sm:$0xff]
    %vm40 = vcmask 1046528
    %v41 = vrot.slane %v35, 1
    %v42 = vrot.slane %v30, 1
    %v43 = vsel %vm40, %v41, %v42
    %v44 = vsel %vm40, %v42, %v41
    %v45 = vrot.slane %v36, 1
    %v46 = vrot.slane %v32, 1
    %v47 = vsel %vm40, %v45, %v46
    %v48 = vsel %vm40, %v46, %v45
    %s49 = scalar_lea.vmem %s1, 8
    %v50 = vld [vmem:[%s49] sm:$0xff]
    %vm51 = vcmask 64512
    %v52 = vsel %vm51, %v43, 0
    %v54 = vsel %vm51, %v44, 0
    %v56 = vsel %vm51, %v47, 0
    %v58 = vsel %vm51, %v48, 0
    %60 = vmatprep.subr.mxu0 0.0
    %61 = vmatpush1.msra.mxu0 %v50
    %62 = vmatprep.subr.mxu0 0.0
    %63 = vmatpush1.msra.mxu0 0.0
    %64 = vmatprep.subr.mxu0 0.0
    %65 = vmatpush1.msra.mxu0 0.0
    %66 = vmatprep.subr.mxu0 0.0
    %67 = vmatpush1.msra.mxu0 0.0
    %68 = vmatprep.subr.mxu0 0.0
    %69 = vmatpush1.msra.mxu0 0.0
    %70 = vmatprep.subr.mxu0 0.0
    %71 = vmatpush1.msra.mxu0 0.0
    %72 = vmatprep.subr.mxu0 0.0
    %73 = vmatpush1.msra.mxu0 0.0
    %74 = vmatprep.subr.mxu0 0.0
    %75 = vmatpush1.msra.mxu0 0.0
    %76 = vmatprep.subr.mxu0 0.0
    %77 = vmatpush1.msra.mxu0 0.0
    %78 = vmatprep.subr.mxu0 0.0
    %79 = vmatpush1.msra.mxu0 0.0
    %80 = vmatprep.subr.mxu0 0.0
    %81 = vmatpush1.msra.mxu0 0.0
    %82 = vmatprep.subr.mxu0 0.0
    %83 = vmatpush1.msra.mxu0 0.0
    %84 = vmatprep.subr.mxu0 0.0
    %85 = vmatpush1.msra.mxu0 0.0
    %86 = vmatprep.subr.mxu0 0.0
    %87 = vmatpush1.msra.mxu0 0.0
    %88 = vmatprep.subr.mxu0 0.0
    %89 = vmatpush1.msra.mxu0 0.0
    %90 = vmatprep.subr.mxu0 0.0
    %91 = vmatpush1.msra.mxu0 0.0
    %92 = vmatprep.subr.mxu0 0.0
    %93 = vmatpush1.msra.mxu0 0.0
    %94 = vmatprep.subr.mxu0 0.0
    %95 = vmatpush1.msra.mxu0 0.0
    %96 = vmatprep.subr.mxu0 0.0
    %97 = vmatpush1.msra.mxu0 0.0
    %98 = vmatprep.subr.mxu0 0.0
    %99 = vmatpush1.msra.mxu0 0.0
    %100 = vmatprep.subr.mxu0 0.0
    %101 = vmatpush1.msra.mxu0 0.0
    %102 = vmatprep.subr.mxu0 0.0
    %103 = vmatpush1.msra.mxu0 0.0
    %104 = vmatprep.subr.mxu0 0.0
    %105 = vmatpush1.msra.mxu0 0.0
    %106 = vmatprep.subr.mxu0 0.0
    %107 = vmatpush1.msra.mxu0 0.0
    %108 = vmatprep.subr.mxu0 0.0
    %109 = vmatpush1.msra.mxu0 0.0
    %110 = vmatprep.subr.mxu0 0.0
    %111 = vmatpush1.msra.mxu0 0.0
    %112 = vmatprep.subr.mxu0 0.0
    %113 = vmatpush1.msra.mxu0 0.0
    %114 = vmatprep.subr.mxu0 0.0
    %115 = vmatpush1.msra.mxu0 0.0
    %116 = vmatprep.subr.mxu0 0.0
    %117 = vmatpush1.msra.mxu0 0.0
    %118 = vmatprep.subr.mxu0 0.0
    %119 = vmatpush1.msra.mxu0 0.0
    %120 = vmatprep.subr.mxu0 0.0
    %121 = vmatpush1.msra.mxu0 0.0
    %122 = vmatprep.subr.mxu0 0.0
    %123 = vmatpush1.msra.mxu0 0.0
    %124 = vmatprep.mubr.f32.mxu0 0.0
    %125 = vmatmul.mubr.f32.gmra.mrb[0].mxu0 %v52
    %v126 = vpop.f32.mrb[0].mxu0
    %v127 = vadd.f32 0.0, %v126
    %v128 = vpop.f32.mrb[0].mxu0
    %129 = vmatprep.mubr.f32.mxu0 0.0
    %130 = vmatmul.mubr.f32.gmra.mrb[0].mxu0 %v54
    %v131 = vpop.f32.mrb[0].mxu0
    %v132 = vadd.f32 0.0, %v131
    %v133 = vpop.f32.mrb[0].mxu0
    %134 = vmatprep.mubr.f32.mxu0 0.0
    %135 = vmatmul.mubr.f32.gmra.mrb[0].mxu0 %v56
    %v136 = vpop.f32.mrb[0].mxu0
    %v137 = vadd.f32 0.0, %v136
    %v138 = vpop.f32.mrb[0].mxu0
    %139 = vmatprep.mubr.f32.mxu0 0.0
    %140 = vmatmul.mubr.f32.gmra.mrb[0].mxu0 %v58
    %v141 = vpop.f32.mrb[0].mxu0
    %v142 = vadd.f32 0.0, %v141
    %v143 = vpop.f32.mrb[0].mxu0
    %144 = vdwg.mxu0
    %v145 = vsel %vm51, %v35, 0
    %v147 = vsel %vm51, %v30, 0
    %v149 = vsel %vm51, %v36, 0
    %v151 = vsel %vm51, %v32, 0
    %153 = vmatprep.subr.mxu0 0.0
    %154 = vmatpush1.msra.mxu0 %v37
    %155 = vmatprep.subr.mxu0 0.0
    %156 = vmatpush1.msra.mxu0 0.0
    %157 = vmatprep.subr.mxu0 0.0
    %158 = vmatpush1.msra.mxu0 0.0
    %159 = vmatprep.subr.mxu0 0.0
    %160 = vmatpush1.msra.mxu0 0.0
    %161 = vmatprep.subr.mxu0 0.0
    %162 = vmatpush1.msra.mxu0 0.0
    %163 = vmatprep.subr.mxu0 0.0
    %164 = vmatpush1.msra.mxu0 0.0
    %165 = vmatprep.subr.mxu0 0.0
    %166 = vmatpush1.msra.mxu0 0.0
    %167 = vmatprep.subr.mxu0 0.0
    %168 = vmatpush1.msra.mxu0 0.0
    %169 = vmatprep.subr.mxu0 0.0
    %170 = vmatpush1.msra.mxu0 0.0
    %171 = vmatprep.subr.mxu0 0.0
    %172 = vmatpush1.msra.mxu0 0.0
    %173 = vmatprep.subr.mxu0 0.0
    %174 = vmatpush1.msra.mxu0 0.0
    %175 = vmatprep.subr.mxu0 0.0
    %176 = vmatpush1.msra.mxu0 0.0
    %177 = vmatprep.subr.mxu0 0.0
    %178 = vmatpush1.msra.mxu0 0.0
    %179 = vmatprep.subr.mxu0 0.0
    %180 = vmatpush1.msra.mxu0 0.0
    %181 = vmatprep.subr.mxu0 0.0
    %182 = vmatpush1.msra.mxu0 0.0
    %183 = vmatprep.subr.mxu0 0.0
    %184 = vmatpush1.msra.mxu0 0.0
    %185 = vmatprep.subr.mxu0 0.0
    %186 = vmatpush1.msra.mxu0 0.0
    %187 = vmatprep.subr.mxu0 0.0
    %188 = vmatpush1.msra.mxu0 0.0
    %189 = vmatprep.subr.mxu0 0.0
    %190 = vmatpush1.msra.mxu0 0.0
    %191 = vmatprep.subr.mxu0 0.0
    %192 = vmatpush1.msra.mxu0 0.0
    %193 = vmatprep.subr.mxu0 0.0
    %194 = vmatpush1.msra.mxu0 0.0
    %195 = vmatprep.subr.mxu0 0.0
    %196 = vmatpush1.msra.mxu0 0.0
    %197 = vmatprep.subr.mxu0 0.0
    %198 = vmatpush1.msra.mxu0 0.0
    %199 = vmatprep.subr.mxu0 0.0
    %200 = vmatpush1.msra.mxu0 0.0
    %201 = vmatprep.subr.mxu0 0.0
    %202 = vmatpush1.msra.mxu0 0.0
    %203 = vmatprep.subr.mxu0 0.0
    %204 = vmatpush1.msra.mxu0 0.0
    %205 = vmatprep.subr.mxu0 0.0
    %206 = vmatpush1.msra.mxu0 0.0
    %207 = vmatprep.subr.mxu0 0.0
    %208 = vmatpush1.msra.mxu0 0.0
    %209 = vmatprep.subr.mxu0 0.0
    %210 = vmatpush1.msra.mxu0 0.0
    %211 = vmatprep.subr.mxu0 0.0
    %212 = vmatpush1.msra.mxu0 0.0
    %213 = vmatprep.subr.mxu0 0.0
    %214 = vmatpush1.msra.mxu0 0.0
    %215 = vmatprep.subr.mxu0 0.0
    %216 = vmatpush1.msra.mxu0 0.0
    %217 = vmatprep.mubr.f32.mxu0 0.0
    %218 = vmatmul.mubr.f32.gmra.mrb[0].mxu0 %v145
    %v219 = vpop.f32.mrb[0].mxu0
    %v220 = vadd.f32 %v127, %v219
    %v221 = vpop.f32.mrb[0].mxu0
    %222 = vmatprep.mubr.f32.mxu0 0.0
    %223 = vmatmul.mubr.f32.gmra.mrb[0].mxu0 %v147
    %v224 = vpop.f32.mrb[0].mxu0
    %v225 = vadd.f32 %v132, %v224
    %v226 = vpop.f32.mrb[0].mxu0
    %227 = vmatprep.mubr.f32.mxu0 0.0
    %228 = vmatmul.mubr.f32.gmra.mrb[0].mxu0 %v149
    %v229 = vpop.f32.mrb[0].mxu0
    %v230 = vadd.f32 %v137, %v229
    %v231 = vpop.f32.mrb[0].mxu0
    %232 = vmatprep.mubr.f32.mxu0 0.0
    %233 = vmatmul.mubr.f32.gmra.mrb[0].mxu0 %v151
    %v234 = vpop.f32.mrb[0].mxu0
    %v235 = vadd.f32 %v142, %v234
    %v236 = vpop.f32.mrb[0].mxu0
    %237 = vdwg.mxu0
    %vm238 = vcmask 1045504
    %v239 = vrot.slane %v35, 2
    %v240 = vrot.slane %v30, 2
    %v241 = vsel %vm238, %v239, %v240
    %v242 = vsel %vm238, %v240, %v239
    %v243 = vrot.slane %v36, 2
    %v244 = vrot.slane %v32, 2
    %v245 = vsel %vm238, %v243, %v244
    %v246 = vsel %vm238, %v244, %v243
    %s247 = scalar_lea.vmem %s1, 16
    %v248 = vld [vmem:[%s247] sm:$0xff]
    %v249 = vsel %vm51, %v241, 0
    %v251 = vsel %vm51, %v242, 0
    %v253 = vsel %vm51, %v245, 0
    %v255 = vsel %vm51, %v246, 0
    %257 = vmatprep.subr.mxu0 0.0
    %258 = vmatpush1.msra.mxu0 %v248
    %259 = vmatprep.subr.mxu0 0.0
    %260 = vmatpush1.msra.mxu0 0.0
    %261 = vmatprep.subr.mxu0 0.0
    %262 = vmatpush1.msra.mxu0 0.0
    %263 = vmatprep.subr.mxu0 0.0
    %264 = vmatpush1.msra.mxu0 0.0
    %265 = vmatprep.subr.mxu0 0.0
    %266 = vmatpush1.msra.mxu0 0.0
    %267 = vmatprep.subr.mxu0 0.0
    %268 = vmatpush1.msra.mxu0 0.0
    %269 = vmatprep.subr.mxu0 0.0
    %270 = vmatpush1.msra.mxu0 0.0
    %271 = vmatprep.subr.mxu0 0.0
    %272 = vmatpush1.msra.mxu0 0.0
    %273 = vmatprep.subr.mxu0 0.0
    %274 = vmatpush1.msra.mxu0 0.0
    %275 = vmatprep.subr.mxu0 0.0
    %276 = vmatpush1.msra.mxu0 0.0
    %277 = vmatprep.subr.mxu0 0.0
    %278 = vmatpush1.msra.mxu0 0.0
    %279 = vmatprep.subr.mxu0 0.0
    %280 = vmatpush1.msra.mxu0 0.0
    %281 = vmatprep.subr.mxu0 0.0
    %282 = vmatpush1.msra.mxu0 0.0
    %283 = vmatprep.subr.mxu0 0.0
    %284 = vmatpush1.msra.mxu0 0.0
    %285 = vmatprep.subr.mxu0 0.0
    %286 = vmatpush1.msra.mxu0 0.0
    %287 = vmatprep.subr.mxu0 0.0
    %288 = vmatpush1.msra.mxu0 0.0
    %289 = vmatprep.subr.mxu0 0.0
    %290 = vmatpush1.msra.mxu0 0.0
    %291 = vmatprep.subr.mxu0 0.0
    %292 = vmatpush1.msra.mxu0 0.0
    %293 = vmatprep.subr.mxu0 0.0
    %294 = vmatpush1.msra.mxu0 0.0
    %295 = vmatprep.subr.mxu0 0.0
    %296 = vmatpush1.msra.mxu0 0.0
    %297 = vmatprep.subr.mxu0 0.0
    %298 = vmatpush1.msra.mxu0 0.0
    %299 = vmatprep.subr.mxu0 0.0
    %300 = vmatpush1.msra.mxu0 0.0
    %301 = vmatprep.subr.mxu0 0.0
    %302 = vmatpush1.msra.mxu0 0.0
    %303 = vmatprep.subr.mxu0 0.0
    %304 = vmatpush1.msra.mxu0 0.0
    %305 = vmatprep.subr.mxu0 0.0
    %306 = vmatpush1.msra.mxu0 0.0
    %307 = vmatprep.subr.mxu0 0.0
    %308 = vmatpush1.msra.mxu0 0.0
    %309 = vmatprep.subr.mxu0 0.0
    %310 = vmatpush1.msra.mxu0 0.0
    %311 = vmatprep.subr.mxu0 0.0
    %312 = vmatpush1.msra.mxu0 0.0
    %313 = vmatprep.subr.mxu0 0.0
    %314 = vmatpush1.msra.mxu0 0.0
    %315 = vmatprep.subr.mxu0 0.0
    %316 = vmatpush1.msra.mxu0 0.0
    %317 = vmatprep.subr.mxu0 0.0
    %318 = vmatpush1.msra.mxu0 0.0
    %319 = vmatprep.subr.mxu0 0.0
    %320 = vmatpush1.msra.mxu0 0.0
    %321 = vmatprep.mubr.f32.mxu0 0.0
    %322 = vmatmul.mubr.f32.gmra.mrb[0].mxu0 %v249
    %v323 = vpop.f32.mrb[0].mxu0
    %v324 = vadd.f32 0.0, %v323
    %v325 = vpop.f32.mrb[0].mxu0
    %326 = vmatprep.mubr.f32.mxu0 0.0
    %327 = vmatmul.mubr.f32.gmra.mrb[0].mxu0 %v251
    %v328 = vpop.f32.mrb[0].mxu0
    %v329 = vadd.f32 0.0, %v328
    %v330 = vpop.f32.mrb[0].mxu0
    %331 = vmatprep.mubr.f32.mxu0 0.0
    %332 = vmatmul.mubr.f32.gmra.mrb[0].mxu0 %v253
    %v333 = vpop.f32.mrb[0].mxu0
    %v334 = vadd.f32 0.0, %v333
    %v335 = vpop.f32.mrb[0].mxu0
    %336 = vmatprep.mubr.f32.mxu0 0.0
    %337 = vmatmul.mubr.f32.gmra.mrb[0].mxu0 %v255
    %v338 = vpop.f32.mrb[0].mxu0
    %v339 = vadd.f32 0.0, %v338
    %v340 = vpop.f32.mrb[0].mxu0
    %341 = vdwg.mxu0
    %v342 = vadd.f32 %v220, %v324
    %v343 = vadd.f32 %v225, %v329
    %v344 = vadd.f32 %v230, %v334
    %v345 = vadd.f32 %v235, %v339
    %346 = vst.msk [vmem:[%s2] sm:$0xff] %vm51, %v342
    %347 = vst.msk [vmem:[%s2 + $0x8] sm:$0xff] %vm51, %v343
    %348 = vst.msk [vmem:[%s2 + $0x10] sm:$0xff] %vm51, %v344
    %349 = vst.msk [vmem:[%s2 + $0x18] sm:$0xff] %vm51, %v345
    %v350 = vsel %vm51, %v342, 0.0
    %v351 = vsel %vm51, %v343, 0.0
    %v352 = vadd.f32 %v350, %v351
    %v353 = vsel %vm51, %v344, 0.0
    %v354 = vadd.f32 %v352, %v353
    %v355 = vsel %vm51, %v345, 0.0
    %v356 = vadd.f32 %v354, %v355
    %v357 = vrot.slane %v356, 4
    %v358 = vadd.f32 %v356, %v357
    %v359 = vrot.slane %v358, 2
    %v360 = vadd.f32 %v358, %v359
    %v361 = vrot.slane %v360, 1
    %v362 = vadd.f32 %v360, %v361
    %vm363 = vcmask 57344
    %364 = vst.msk [vmem:[#allocation2] sm:$0x1] %vm363, %v362
    %v365 = vmul.f32 %v342, %v342
    %v366 = vmul.f32 %v343, %v343
    %v367 = vmul.f32 %v344, %v344
    %v368 = vmul.f32 %v345, %v345
    %v369 = vsel %vm51, %v365, 0.0
    %v370 = vsel %vm51, %v366, 0.0
    %v371 = vadd.f32 %v369, %v370
    %v372 = vsel %vm51, %v367, 0.0
    %v373 = vadd.f32 %v371, %v372
    %v374 = vsel %vm51, %v368, 0.0
    %v375 = vadd.f32 %v373, %v374
    %v376 = vrot.slane %v375, 4
    %v377 = vadd.f32 %v375, %v376
    %v378 = vrot.slane %v377, 2
    %v379 = vadd.f32 %v377, %v378
    %v380 = vrot.slane %v379, 1
    %v381 = vadd.f32 %v379, %v380
    %382 = vst.msk [vmem:[#allocation4] sm:$0x1] %vm363, %v381
    // Predicated region
    $region10: #{tpu_custom_call.1} parent=1 // pred_check
      _
    $region11: #{tpu_custom_call.1} parent=1 // pred_check_branch
      %384 = sbr.rel (0) target = $region13
    $region12: #{tpu_custom_call.1} parent=1 // pred_region
      _
    $region13: #{tpu_custom_call.1} parent=1 // pred_fallthru
      _
    // Predicated region
    $region14: #{tpu_custom_call.1} parent=1 // pred_check
      _
    $region15: #{tpu_custom_call.1} parent=1 // pred_check_branch
      %386 = sbr.rel (0) target = $region17
    $region16: #{tpu_custom_call.1} parent=1 // pred_region
      %s388 = ssub.s32 16, 16
      %389 = vsyncadd [#allocation3], %s388
      %s391 = sshll.u32 [#allocation2], 4
      %s392 = int_to_ptr.vmem [resolvable:$true] %s391
      %394 = dma.vmem_to_hbm [thread:$0]  %s392, 16, %s3, [#allocation3]
    $region17: #{tpu_custom_call.1} parent=1 // pred_fallthru
      _
    // Predicated region
    $region18: #{tpu_custom_call.1} parent=1 // pred_check
      _
    $region19: #{tpu_custom_call.1} parent=1 // pred_check_branch
      %396 = sbr.rel (0) target = $region21
    $region20: #{tpu_custom_call.1} parent=1 // pred_region
      %s398 = ssub.s32 16, 16
      %399 = vsyncadd [#allocation5], %s398
      %s401 = sshll.u32 [#allocation4], 4
      %s402 = int_to_ptr.vmem [resolvable:$true] %s401
      %404 = dma.vmem_to_hbm [thread:$0]  %s402, 16, %s4, [#allocation5]
    $region21: #{tpu_custom_call.1} parent=1 // pred_fallthru
      _
    // Predicated region
    $region22: #{tpu_custom_call.1} parent=1 // pred_check
      _
    $region23: #{tpu_custom_call.1} parent=1 // pred_check_branch
      %406 = sbr.rel (0) target = $region25
    $region24: #{tpu_custom_call.1} parent=1 // pred_region
      _
    $region25: #{tpu_custom_call.1} parent=1 // pred_fallthru
      _
    // Predicated region
    $region26: #{tpu_custom_call.1} parent=1 // pred_check
      _
    $region27: #{tpu_custom_call.1} parent=1 // pred_check_branch
      %408 = sbr.rel (0) target = $region29
    $region28: #{tpu_custom_call.1} parent=1 // pred_region
      %409 = dma.done [#allocation3], 16
    $region29: #{tpu_custom_call.1} parent=1 // pred_fallthru
      _
    // Predicated region
    $region30: #{tpu_custom_call.1} parent=1 // pred_check
      _
    $region31: #{tpu_custom_call.1} parent=1 // pred_check_branch
      %411 = sbr.rel (0) target = $region33
    $region32: #{tpu_custom_call.1} parent=1 // pred_region
      %412 = dma.done [#allocation5], 16
    $region33: #{tpu_custom_call.1} parent=1 // pred_fallthru
      _
    %413 = vsyncpa [#allocation3], 1
    %414 = vsyncpa [#allocation5], 1

</llo_original>
